<compile_context>
chip_gen: v5e
topology: v5e:2x2
jax: 0.10.0
libtpu: 0.0.40
codegen_flags: <defaults>
</compile_context>

<pallas_src>
import math

import jax
import jax.numpy as jnp
from jax.experimental import pallas as pl
from jax.experimental.pallas import tpu as pltpu

_INV_SQRT2 = 1.0 / math.sqrt(2.0)


def adapter_kernel(x_ref, wd_ref, bd_ref, wu_ref, bu_ref, o_ref):
    """One (tile_m, D) row-block: LayerNorm -> down-proj -> GELU -> up-proj."""
    x = x_ref[...].astype(jnp.float32)

    # LayerNorm over the full-width feature axis; two-pass stats for numerical
    # stability, eps matches nn.LayerNorm default.  The affine (gamma/beta) is
    # folded into w_down/b_down by prepare_adapter_params.
    mean = jnp.mean(x, axis=-1, keepdims=True)
    xc = x - mean
    var = jnp.mean(xc * xc, axis=-1, keepdims=True)
    x_norm = xc * jax.lax.rsqrt(var + 1e-5)

    # Down projection (MXU) + exact GELU (erf form, nn.GELU default).
    down = jnp.dot(x_norm.astype(wd_ref.dtype), wd_ref[...],
                   preferred_element_type=jnp.float32) + bd_ref[...]
    act = 0.5 * down * (1.0 + jax.lax.erf(down * _INV_SQRT2))

    # Up projection; the residual-adapter scale is folded into w_up/b_up.
    up = jnp.dot(act.astype(wu_ref.dtype), wu_ref[...],
                 preferred_element_type=jnp.float32) + bu_ref[...]

    # TODO(synk): dropout is identity in inference mode; training-mode dropout
    # would draw a keep-mask via pltpu.prng_seed / pltpu.prng_random_bits.
    o_ref[...] = up.astype(o_ref.dtype)


def _round_up(n, m):
    return ((n + m - 1) // m) * m


def _vmem_budget_bytes():
    """~75% of per-core VMEM: ~48 MiB on v7x, ~96 MiB on v5e/v6e."""
    cap = 64 << 20  # conservative default (v7x per-TensorCore)
    try:
        info = pltpu.get_tpu_info()
        cap = int(getattr(info, "vmem_capacity_bytes", cap) or cap)
    except Exception:
        pass
    return min(int(cap * 3 // 4), 112 << 20)


def prepare_adapter_params(params, matmul_dtype=None):
    """One-time parameter prep (hoisted out of the per-call path).

    Folds the LayerNorm affine into the down projection and the residual scale
    into the up projection:
        w_down' = gamma[:, None] * w_down     b_down' = beta @ w_down + b_down
        w_up'   = scale * w_up                b_up'   = scale * b_up
    """
    gamma = params["gamma"].astype(jnp.float32)
    beta = params["beta"].astype(jnp.float32)
    scale = jnp.asarray(params["scale"], jnp.float32)
    w_down32 = params["w_down"].astype(jnp.float32)
    w_down = gamma[:, None] * w_down32
    b_down = beta @ w_down32 + params["b_down"].astype(jnp.float32)
    w_up = scale * params["w_up"].astype(jnp.float32)
    b_up = scale * params["b_up"].astype(jnp.float32)
    if matmul_dtype is not None:  # bf16 MXU operands (fast path on v5e/v6e/v7x)
        w_down = w_down.astype(matmul_dtype)
        w_up = w_up.astype(matmul_dtype)
    D, A = w_down.shape
    return {
        "w_down": w_down,                                   # (D, A)
        "b_down": b_down.reshape(1, A).astype(jnp.float32),  # (1, A)
        "w_up": w_up,                                       # (A, D)
        "b_up": b_up.reshape(1, D).astype(jnp.float32),      # (1, D)
    }


def adapter_forward(x, prepared, *, tile_m=None, out_dtype=None):
    """x: [B, S, D]; prepared: output of prepare_adapter_params."""
    B, S, D = x.shape
    Dw, A = prepared["w_down"].shape
    assert Dw == D, "prepared params do not match input feature width"
    M = B * S
    out_dtype = jnp.dtype(out_dtype or x.dtype)

    x2 = x.reshape(M, D)  # contiguous reshape: metadata only, no HBM copy

    # ---- tile_m / VMEM sizing --------------------------------------------
    x_it = jnp.dtype(x.dtype).itemsize
    o_it = out_dtype.itemsize
    w_it = jnp.dtype(prepared["w_down"].dtype).itemsize
    budget = _vmem_budget_bytes()
    headroom = 8 << 20
    resident = 2 * D * A * w_it + (A + D) * 4           # single-buffered params
    # Per-row VMEM cost: double-buffered x/out streams + ~4 f32 (D)-wide and
    # ~2 f32 (A)-wide intermediates.
    per_row = 2 * D * (x_it + o_it) + 4 * D * 4 + 2 * A * 4

    if tile_m is None:
        avail = max(budget - resident - headroom, 8 * per_row)
        tm = int(avail // per_row)
        tm = max(8, min(512, (tm // 8) * 8))
    else:
        tm = max(8, _round_up(int(tile_m), 8))
    tm = min(tm, _round_up(M, 8))                        # clamp tile to problem
    # Keep >= 2 grid steps so ("parallel",) can shard across v7x's 2 cores.
    if pl.cdiv(M, tm) < 2 and M > 8:
        tm = max(8, _round_up(pl.cdiv(M, 2), 8))

    stream_bytes = 2 * tm * D * (x_it + o_it)
    scratch_bytes = tm * (4 * D + 2 * A) * 4
    vmem_limit = int(min(budget, resident + stream_bytes + scratch_bytes + headroom))

    grid = (pl.cdiv(M, tm),)                             # ragged last block masked
    invariant = lambda i: (0, 0)
    wspec = lambda shp: pl.BlockSpec(shp, invariant, pipeline_mode=pl.Buffered(1))

    out2 = pl.pallas_call(
        adapter_kernel,
        out_shape=jax.ShapeDtypeStruct((M, D), out_dtype),
        grid_spec=pltpu.PrefetchScalarGridSpec(
            num_scalar_prefetch=0,
            grid=grid,
            in_specs=[
                pl.BlockSpec((tm, D), lambda i: (i, 0)),   # x rows (streamed)
                wspec((D, A)),                             # w_down (resident)
                wspec((1, A)),                             # b_down
                wspec((A, D)),                             # w_up
                wspec((1, D)),                             # b_up
            ],
            out_specs=pl.BlockSpec((tm, D), lambda i: (i, 0)),
        ),
        compiler_params=pltpu.CompilerParams(
            dimension_semantics=("parallel",),
            vmem_limit_bytes=vmem_limit),
    )(x2, prepared["w_down"], prepared["b_down"],
      prepared["w_up"], prepared["b_up"])

    return out2.reshape(B, S, D)


def init_adapter_params(key, input_dim, adapter_dim=64):
    """Deterministic init mirroring Adapter.__init__."""
    k1, k2, k3 = jax.random.split(key, 3)
    # down_project: weight ~ N(0, 0.001); bias ~ U(-1/sqrt(D), 1/sqrt(D)) (torch default)
    w_down = 0.001 * jax.random.normal(k1, (input_dim, adapter_dim), jnp.float32)
    bound = 1.0 / math.sqrt(input_dim)
    b_down = jax.random.uniform(k3, (adapter_dim,), jnp.float32, -bound, bound)
    # up_project: weight ~ N(0, 0.001), bias = 0
    w_up = 0.001 * jax.random.normal(k2, (adapter_dim, input_dim), jnp.float32)
    b_up = jnp.zeros((input_dim,), jnp.float32)
    return {
        "gamma": jnp.ones((input_dim,), jnp.float32),
        "beta": jnp.zeros((input_dim,), jnp.float32),
        "w_down": w_down, "b_down": b_down,
        "w_up": w_up, "b_up": b_up,
        "scale": jnp.asarray(0.001, jnp.float32),
    }


def adapter_reference(x, params):
    """Pure-JAX reference for validation (mirrors the PyTorch forward, eval mode)."""
    mean = jnp.mean(x, axis=-1, keepdims=True)
    var = jnp.mean((x - mean) ** 2, axis=-1, keepdims=True)
    xn = (x - mean) / jnp.sqrt(var + 1e-5)
    xn = xn * params["gamma"] + params["beta"]
    down = xn @ params["w_down"] + params["b_down"]
    act = jax.nn.gelu(down, approximate=False)
    up = act @ params["w_up"] + params["b_up"]
    return params["scale"] * up


def _rel_err(a, b):
    return float(jnp.max(jnp.abs(a - b)) / (jnp.max(jnp.abs(b)) + 1e-30))


if __name__ == "__main__":
    key = jax.random.PRNGKey(0)
    kx, kp, kg, kb, ko = jax.random.split(key, 5)

    B, S, D, A = 2, 8, 32, 64
    x = jax.random.normal(kx, (B, S, D), jnp.float32)
    params = init_adapter_params(kp, input_dim=D, adapter_dim=A)
    # Non-trivial LayerNorm affine so the weight-folding path is exercised
    # (nn.LayerNorm init is gamma=1, beta=0, for which folding is a no-op).
    params["gamma"] = 1.0 + 0.1 * jax.random.normal(kg, (D,), jnp.float32)
    params["beta"] = 0.05 * jax.random.normal(kb, (D,), jnp.float32)

    prepared = prepare_adapter_params(params)   # one-time, off the hot path
    fwd = jax.jit(adapter_forward)

    # f32 path: semantics check against the pure-JAX reference (relative error,
    # since scale=0.001 makes the outputs O(1e-6) and absolute tols are vacuous).
    out = jax.block_until_ready(fwd(x, prepared))
    ref = adapter_reference(x, params)
    assert out.shape == (B, S, D)
    assert _rel_err(out, ref) < 1e-4, "f32 mismatch vs reference"

    # Ragged token count (M = 14): exercises the cdiv grid + masked last block.
    x_odd = jax.random.normal(ko, (2, 7, D), jnp.float32)
    out_odd = jax.block_until_ready(fwd(x_odd, prepared))
    assert _rel_err(out_odd, adapter_reference(x_odd, params)) < 1e-4, \
        "ragged-M mismatch vs reference"

    # bf16 MXU operands (v6e/v7x fast path), checked with a relative metric.
    prepared_bf16 = prepare_adapter_params(params, matmul_dtype=jnp.bfloat16)
    out_bf16 = jax.block_until_ready(fwd(x, prepared_bf16))
    assert _rel_err(out_bf16, ref) < 5e-2, "bf16 mismatch vs reference"

    print("KERNEL_OK")
</pallas_src>

<mosaic_0001>
module attributes {stable_mosaic.version = 11 : i64} {
  func.func @adapter_kernel(%arg0: i32, %arg1: memref<8x32xf32, #tpu.memory_space<vmem>>, %arg2: memref<32x64xf32, #tpu.memory_space<vmem>>, %arg3: memref<1x64xf32, #tpu.memory_space<vmem>>, %arg4: memref<64x32xf32, #tpu.memory_space<vmem>>, %arg5: memref<1x32xf32, #tpu.memory_space<vmem>>, %arg6: memref<8x32xf32, #tpu.memory_space<vmem>>) attributes {dimension_semantics = [#tpu.dimension_semantics<parallel>], iteration_bounds = array<i64: 2>, scalar_prefetch = 0 : i64, scratch_operands = 0 : i64, tpu.core_type = #tpu.core_type<tc>, window_params = [{transform_indices = @transform_0, window_bounds = array<i64: 8, 32>}, {pipeline_mode = #tpu.pipeline_mode<synchronous>, transform_indices = @transform_1, window_bounds = array<i64: 32, 64>}, {pipeline_mode = #tpu.pipeline_mode<synchronous>, transform_indices = @transform_2, window_bounds = array<i64: 1, 64>}, {pipeline_mode = #tpu.pipeline_mode<synchronous>, transform_indices = @transform_3, window_bounds = array<i64: 64, 32>}, {pipeline_mode = #tpu.pipeline_mode<synchronous>, transform_indices = @transform_4, window_bounds = array<i64: 1, 32>}, {transform_indices = @transform_5, window_bounds = array<i64: 8, 32>}]} {
    %c0 = arith.constant 0 : index
    %c0_0 = arith.constant 0 : index
    %0 = vector.load %arg1[%c0, %c0_0] : memref<8x32xf32, #tpu.memory_space<vmem>>, vector<8x32xf32>
    %cst = arith.constant dense<0.000000e+00> : vector<8xf32>
    %1 = vector.multi_reduction <add>, %0, %cst [1] : vector<8x32xf32> to vector<8xf32>
    %2 = vector.shape_cast %1 : vector<8xf32> to vector<8x1xf32>
    %cst_1 = arith.constant 3.200000e+01 : f32
    %3 = vector.broadcast %cst_1 : f32 to vector<8x1xf32>
    %4 = arith.divf %2, %3 : vector<8x1xf32>
    %5 = vector.broadcast %4 : vector<8x1xf32> to vector<8x32xf32>
    %6 = arith.subf %0, %5 : vector<8x32xf32>
    %7 = arith.mulf %6, %6 : vector<8x32xf32>
    %cst_2 = arith.constant dense<0.000000e+00> : vector<8xf32>
    %8 = vector.multi_reduction <add>, %7, %cst_2 [1] : vector<8x32xf32> to vector<8xf32>
    %9 = vector.shape_cast %8 : vector<8xf32> to vector<8x1xf32>
    %cst_3 = arith.constant 3.200000e+01 : f32
    %10 = vector.broadcast %cst_3 : f32 to vector<8x1xf32>
    %11 = arith.divf %9, %10 : vector<8x1xf32>
    %cst_4 = arith.constant 9.99999974E-6 : f32
    %12 = vector.broadcast %cst_4 : f32 to vector<8x1xf32>
    %13 = arith.addf %11, %12 : vector<8x1xf32>
    %14 = math.rsqrt %13 : vector<8x1xf32>
    %15 = vector.broadcast %14 : vector<8x1xf32> to vector<8x32xf32>
    %16 = arith.mulf %6, %15 : vector<8x32xf32>
    %c0_5 = arith.constant 0 : index
    %c0_6 = arith.constant 0 : index
    %17 = vector.load %arg2[%c0_5, %c0_6] : memref<32x64xf32, #tpu.memory_space<vmem>>, vector<32x64xf32>
    %cst_7 = arith.constant dense<0.000000e+00> : vector<8x64xf32>
    %18 = tpu.matmul %16, %17, %cst_7 {dimension_numbers = #tpu.dot_dimension_numbers<[1], [0], [0], [1], [0, 0, 1, 1], [], []>} : vector<8x32xf32>, vector<32x64xf32>, vector<8x64xf32> -> vector<8x64xf32>
    %c0_8 = arith.constant 0 : index
    %c0_9 = arith.constant 0 : index
    %19 = vector.load %arg3[%c0_8, %c0_9] : memref<1x64xf32, #tpu.memory_space<vmem>>, vector<1x64xf32>
    %20 = vector.broadcast %19 : vector<1x64xf32> to vector<8x64xf32>
    %21 = arith.addf %18, %20 : vector<8x64xf32>
    %cst_10 = arith.constant 5.000000e-01 : f32
    %22 = vector.broadcast %cst_10 : f32 to vector<8x64xf32>
    %23 = arith.mulf %22, %21 : vector<8x64xf32>
    %cst_11 = arith.constant 0.707106769 : f32
    %24 = vector.broadcast %cst_11 : f32 to vector<8x64xf32>
    %25 = arith.mulf %21, %24 : vector<8x64xf32>
    %26 = math.erf %25 : vector<8x64xf32>
    %cst_12 = arith.constant 1.000000e+00 : f32
    %27 = vector.broadcast %cst_12 : f32 to vector<8x64xf32>
    %28 = arith.addf %27, %26 : vector<8x64xf32>
    %29 = arith.mulf %23, %28 : vector<8x64xf32>
    %c0_13 = arith.constant 0 : index
    %c0_14 = arith.constant 0 : index
    %30 = vector.load %arg4[%c0_13, %c0_14] : memref<64x32xf32, #tpu.memory_space<vmem>>, vector<64x32xf32>
    %cst_15 = arith.constant dense<0.000000e+00> : vector<8x32xf32>
    %31 = tpu.matmul %29, %30, %cst_15 {dimension_numbers = #tpu.dot_dimension_numbers<[1], [0], [0], [1], [0, 0, 1, 1], [], []>} : vector<8x64xf32>, vector<64x32xf32>, vector<8x32xf32> -> vector<8x32xf32>
    %c0_16 = arith.constant 0 : index
    %c0_17 = arith.constant 0 : index
    %32 = vector.load %arg5[%c0_16, %c0_17] : memref<1x32xf32, #tpu.memory_space<vmem>>, vector<1x32xf32>
    %33 = vector.broadcast %32 : vector<1x32xf32> to vector<8x32xf32>
    %34 = arith.addf %31, %33 : vector<8x32xf32>
    %c0_18 = arith.constant 0 : index
    %c0_19 = arith.constant 0 : index
    %35 = vector.load %arg6[%c0_18, %c0_19] : memref<8x32xf32, #tpu.memory_space<vmem>>, vector<8x32xf32>
    tpu.vector_store %arg6[%c0_18, %c0_19], %34 {strides = array<i32>} : memref<8x32xf32, #tpu.memory_space<vmem>>, vector<8x32xf32>,
    return
  }
  func.func @transform_0(%arg0: i32) -> (i32, i32) {
    %c0_i32 = arith.constant 0 : i32
    %c0_i32_0 = arith.constant 0 : i32
    return %arg0, %c0_i32 : i32, i32
  }
  func.func @transform_1(%arg0: i32) -> (i32, i32) {
    %c0_i32 = arith.constant 0 : i32
    %c0_i32_0 = arith.constant 0 : i32
    %c0_i32_1 = arith.constant 0 : i32
    return %c0_i32, %c0_i32_0 : i32, i32
  }
  func.func @transform_2(%arg0: i32) -> (i32, i32) {
    %c0_i32 = arith.constant 0 : i32
    %c0_i32_0 = arith.constant 0 : i32
    %c0_i32_1 = arith.constant 0 : i32
    return %c0_i32, %c0_i32_0 : i32, i32
  }
  func.func @transform_3(%arg0: i32) -> (i32, i32) {
    %c0_i32 = arith.constant 0 : i32
    %c0_i32_0 = arith.constant 0 : i32
    %c0_i32_1 = arith.constant 0 : i32
    return %c0_i32, %c0_i32_0 : i32, i32
  }
  func.func @transform_4(%arg0: i32) -> (i32, i32) {
    %c0_i32 = arith.constant 0 : i32
    %c0_i32_0 = arith.constant 0 : i32
    %c0_i32_1 = arith.constant 0 : i32
    return %c0_i32, %c0_i32_0 : i32, i32
  }
  func.func @transform_5(%arg0: i32) -> (i32, i32) {
    %c0_i32 = arith.constant 0 : i32
    %c0_i32_0 = arith.constant 0 : i32
    return %arg0, %c0_i32 : i32, i32
  }
}

</mosaic_0001>

<llo_original>
// kernel: adapter_forward.1
$region0: #{adapter_forward.1}
  #allocation0 [shape = 'u32[]', space=smem, size = 0x4, offset = 0x4, fixed_abs, tag = 'smem constant byte address 0x4 - core index']
  #allocation1 [shape = 'u32[72,128]{1,0:T(1,128)}', space=vmem, size = 0x9000, scoped, tag = 'internal scratch']
  %s0 = inlined_call_operand.vmem [shape: f32[16,32], index: 0, kind: input, shape index: {}]
  %s1 = inlined_call_operand.vmem [shape: f32[32,64], index: 1, kind: input, shape index: {}]
  %s2 = inlined_call_operand.vmem [shape: f32[1,64], index: 2, kind: input, shape index: {}]
  %s3 = inlined_call_operand.vmem [shape: f32[64,32], index: 3, kind: input, shape index: {}]
  %s4 = inlined_call_operand.vmem [shape: f32[1,32], index: 4, kind: input, shape index: {}]
  %s5 = inlined_call_operand.hbm [shape: f32[16,32], index: 5, kind: output, shape index: {}]
  %s6 = sld [smem:[#allocation0]]
  $region53: #{adapter_forward.1} parent=0
    _
  %s8 = ssub.s32 1, %s6
  %s9 = scalar_select 0, %s8, %s6
  $region1: #{adapter_forward.1} parent=0
    #allocation2 [shape = 'u8[8192]{0}', space=vmem, size = 0x2000, scoped, tag = 'output window, operand 0']
    #allocation3 [shape = 's32[2]{0}', space=sflag, size = 0x8, scoped, tag = 'scoped memory for adapter_forward.1']
    %10 = vsyncpa [#allocation3], 0
    %s11 = scalar_lea.sflag [#allocation3], 1
    %12 = vsyncpa %s11, 0
    loop: start=0, step=1, limit=4
    $region2: #{adapter_forward.1} parent=1 // loop_pre_header
      _
    $region3: #{adapter_forward.1} parent=1 // loop_header
      %s14 = sphi 0, %s18
      %p15 = scmp.ge.s32.totalorder %s14, 4
      %s24 = sphi 0, %s26
      %s27 = sphi 0, %s24
      %s28 = sphi 0, %s27
      %s44 = sphi 0, %s28
      %s48 = sphi 0, %s48
      %s50 = sphi 0, %s48
      %s51 = sphi 0, %s50
      %s65 = sphi 0, %s51
      %s69 = sphi 0, %s69
      %s71 = sphi 0, %s69
      %s72 = sphi 0, %s71
      %s86 = sphi 0, %s72
      %s90 = sphi 0, %s90
      %s92 = sphi 0, %s90
      %s93 = sphi 0, %s92
      %s107 = sphi 0, %s93
      %s111 = sphi 0, %s111
      %s113 = sphi 0, %s111
      %s114 = sphi 0, %s113
      %s128 = sphi 0, %s114
      %s134 = sphi 0, %s136
      %s137 = sphi 0, %s134
      %s138 = sphi 0, %s137
      %s154 = sphi 0, %s138
    $region4: #{adapter_forward.1} parent=1 // loop_header_branch
      %17 = sbr.rel (%p15) target = $region8
    $region5: #{adapter_forward.1} parent=1 // loop_body
      %s19 = ssub.s32 %s14, 1
      %s20 = ssub.s32 %s14, 2
      %s21 = sadd.s32 %s14, 1
      %s22 = ssub.s32 %s14, %s21
      %p23 = scmp.eq.s32.totalorder %s22, 0
      %s25 = sadd.s32 %s24, 1
      %s26 = scalar_select %p23, %s24, %s25
      %p29 = pneg %p23
      %p30 = scmp.eq.s32.totalorder %s14, 1
      %p31 = por %p29, %p30
      %p32 = scmp.ne.s32.totalorder %s24, %s27
      %p33 = scmp.eq.s32.totalorder %s14, 0
      %p34 = por %p32, %p33
      %p35 = scmp.ne.s32.totalorder %s24, %s27
      %p36 = scmp.eq.s32.totalorder %s19, 1
      %p37 = por %p35, %p36
      %p38 = scmp.ne.s32.totalorder %s27, %s28
      %p39 = scmp.eq.s32.totalorder %s19, 0
      %p40 = por %p38, %p39
      %p41 = scmp.ne.s32.totalorder %s27, %s28
      %p42 = scmp.eq.s32.totalorder %s20, 1
      %p43 = por %p41, %p42
      %p45 = scmp.ne.s32.totalorder %s28, %s44
      %p46 = scmp.eq.s32.totalorder %s20, 0
      %p47 = por %p45, %p46
      %s49 = sadd.s32 %s48, 1
      %p52 = scmp.eq.s32.totalorder %s14, 1
      %p53 = scmp.ne.s32.totalorder %s48, %s50
      %p54 = scmp.eq.s32.totalorder %s14, 0
      %p55 = por %p53, %p54
      %p56 = scmp.ne.s32.totalorder %s48, %s50
      %p57 = scmp.eq.s32.totalorder %s19, 1
      %p58 = por %p56, %p57
      %p59 = scmp.ne.s32.totalorder %s50, %s51
      %p60 = scmp.eq.s32.totalorder %s19, 0
      %p61 = por %p59, %p60
      %p62 = scmp.ne.s32.totalorder %s50, %s51
      %p63 = scmp.eq.s32.totalorder %s20, 1
      %p64 = por %p62, %p63
      %p66 = scmp.ne.s32.totalorder %s51, %s65
      %p67 = scmp.eq.s32.totalorder %s20, 0
      %p68 = por %p66, %p67
      %s70 = sadd.s32 %s69, 1
      %p73 = scmp.eq.s32.totalorder %s14, 1
      %p74 = scmp.ne.s32.totalorder %s69, %s71
      %p75 = scmp.eq.s32.totalorder %s14, 0
      %p76 = por %p74, %p75
      %p77 = scmp.ne.s32.totalorder %s69, %s71
      %p78 = scmp.eq.s32.totalorder %s19, 1
      %p79 = por %p77, %p78
      %p80 = scmp.ne.s32.totalorder %s71, %s72
      %p81 = scmp.eq.s32.totalorder %s19, 0
      %p82 = por %p80, %p81
      %p83 = scmp.ne.s32.totalorder %s71, %s72
      %p84 = scmp.eq.s32.totalorder %s20, 1
      %p85 = por %p83, %p84
      %p87 = scmp.ne.s32.totalorder %s72, %s86
      %p88 = scmp.eq.s32.totalorder %s20, 0
      %p89 = por %p87, %p88
      %s91 = sadd.s32 %s90, 1
      %p94 = scmp.eq.s32.totalorder %s14, 1
      %p95 = scmp.ne.s32.totalorder %s90, %s92
      %p96 = scmp.eq.s32.totalorder %s14, 0
      %p97 = por %p95, %p96
      %p98 = scmp.ne.s32.totalorder %s90, %s92
      %p99 = scmp.eq.s32.totalorder %s19, 1
      %p100 = por %p98, %p99
      %p101 = scmp.ne.s32.totalorder %s92, %s93
      %p102 = scmp.eq.s32.totalorder %s19, 0
      %p103 = por %p101, %p102
      %p104 = scmp.ne.s32.totalorder %s92, %s93
      %p105 = scmp.eq.s32.totalorder %s20, 1
      %p106 = por %p104, %p105
      %p108 = scmp.ne.s32.totalorder %s93, %s107
      %p109 = scmp.eq.s32.totalorder %s20, 0
      %p110 = por %p108, %p109
      %s112 = sadd.s32 %s111, 1
      %p115 = scmp.eq.s32.totalorder %s14, 1
      %p116 = scmp.ne.s32.totalorder %s111, %s113
      %p117 = scmp.eq.s32.totalorder %s14, 0
      %p118 = por %p116, %p117
      %p119 = scmp.ne.s32.totalorder %s111, %s113
      %p120 = scmp.eq.s32.totalorder %s19, 1
      %p121 = por %p119, %p120
      %p122 = scmp.ne.s32.totalorder %s113, %s114
      %p123 = scmp.eq.s32.totalorder %s19, 0
      %p124 = por %p122, %p123
      %p125 = scmp.ne.s32.totalorder %s113, %s114
      %p126 = scmp.eq.s32.totalorder %s20, 1
      %p127 = por %p125, %p126
      %p129 = scmp.ne.s32.totalorder %s114, %s128
      %p130 = scmp.eq.s32.totalorder %s20, 0
      %p131 = por %p129, %p130
      %s132 = ssub.s32 %s14, %s21
      %p133 = scmp.eq.s32.totalorder %s132, 0
      %s135 = sadd.s32 %s134, 1
      %s136 = scalar_select %p133, %s134, %s135
      %p139 = pneg %p133
      %p140 = scmp.eq.s32.totalorder %s14, 1
      %p141 = por %p139, %p140
      %p142 = scmp.ne.s32.totalorder %s134, %s137
      %p143 = scmp.eq.s32.totalorder %s14, 0
      %p144 = por %p142, %p143
      %p145 = scmp.ne.s32.totalorder %s134, %s137
      %p146 = scmp.eq.s32.totalorder %s19, 1
      %p147 = por %p145, %p146
      %p148 = scmp.ne.s32.totalorder %s137, %s138
      %p149 = scmp.eq.s32.totalorder %s19, 0
      %p150 = por %p148, %p149
      %p151 = scmp.ne.s32.totalorder %s137, %s138
      %p152 = scmp.eq.s32.totalorder %s20, 1
      %p153 = por %p151, %p152
      %p155 = scmp.ne.s32.totalorder %s138, %s154
      %p156 = scmp.eq.s32.totalorder %s20, 0
      %p157 = por %p155, %p156
      %p158 = scmp.le.s32.totalorder 1, %s14
      %p159 = scmp.lt.s32.totalorder %s14, 3
      %p160 = pnand %p158, %p159
      %p161 = pneg %p160
      // Predicated region
      $region9: #{adapter_forward.1} parent=5 // pred_check
        _
      $region10: #{adapter_forward.1} parent=5 // pred_check_branch
        %163 = sbr.rel (%p160) target = $region12
      $region11: #{adapter_forward.1} parent=5 // pred_region
        %s164 = ssub.s32 %s14, 1
        // Predicated region
        $region13: #{adapter_forward.1} parent=11 // pred_check
          %p165 = pneg %p61
        $region14: #{adapter_forward.1} parent=11 // pred_check_branch
          %167 = sbr.rel (%p165) target = $region16
        $region15: #{adapter_forward.1} parent=11 // pred_region
          _
        $region16: #{adapter_forward.1} parent=11 // pred_fallthru
          _
        // Predicated region
        $region17: #{adapter_forward.1} parent=11 // pred_check
          %p168 = pneg %p82
        $region18: #{adapter_forward.1} parent=11 // pred_check_branch
          %170 = sbr.rel (%p168) target = $region20
        $region19: #{adapter_forward.1} parent=11 // pred_region
          _
        $region20: #{adapter_forward.1} parent=11 // pred_fallthru
          _
        // Predicated region
        $region21: #{adapter_forward.1} parent=11 // pred_check
          %p171 = pneg %p103
        $region22: #{adapter_forward.1} parent=11 // pred_check_branch
          %173 = sbr.rel (%p171) target = $region24
        $region23: #{adapter_forward.1} parent=11 // pred_region
          _
        $region24: #{adapter_forward.1} parent=11 // pred_fallthru
          _
        // Predicated region
        $region25: #{adapter_forward.1} parent=11 // pred_check
          %p174 = pneg %p124
        $region26: #{adapter_forward.1} parent=11 // pred_check_branch
          %176 = sbr.rel (%p174) target = $region28
        $region27: #{adapter_forward.1} parent=11 // pred_region
          _
        $region28: #{adapter_forward.1} parent=11 // pred_fallthru
          _
      $region12: #{adapter_forward.1} parent=5 // pred_fallthru
        _
      %p177 = scmp.lt.s32.totalorder %s14, 2
      // Predicated region
      $region29: #{adapter_forward.1} parent=5 // pred_check
        %p178 = pneg %p177
      $region30: #{adapter_forward.1} parent=5 // pred_check_branch
        %180 = sbr.rel (%p178) target = $region32
      $region31: #{adapter_forward.1} parent=5 // pred_region
        // Predicated region
        $region33: #{adapter_forward.1} parent=31 // pred_check
          %p181 = pneg %p34
        $region34: #{adapter_forward.1} parent=31 // pred_check_branch
          %183 = sbr.rel (%p181) target = $region36
        $region35: #{adapter_forward.1} parent=31 // pred_region
          %p184 = scmp.lt.s32.totalorder %s14, 1
          %s185 = scalar_select %p184, %s14, 1
          %s186 = smul.addr %s185, 8
          %s187 = scalar_lea.vmem %s0, %s186
        $region36: #{adapter_forward.1} parent=31 // pred_fallthru
          _
      $region32: #{adapter_forward.1} parent=5 // pred_fallthru
        _
      %p188 = scmp.le.s32.totalorder 1, %s14
      %p189 = scmp.lt.s32.totalorder %s14, 3
      %p190 = pnand %p188, %p189
      %p191 = pneg %p190
      // Predicated region
      $region37: #{adapter_forward.1} parent=5 // pred_check
        _
      $region38: #{adapter_forward.1} parent=5 // pred_check_branch
        %193 = sbr.rel (%p190) target = $region40
      $region39: #{adapter_forward.1} parent=5 // pred_region
        %s194 = ssub.s32 %s14, 1
        %p195 = scmp.lt.s32.totalorder %s19, 1
        %s196 = scalar_select %p195, %s19, 1
        %s197 = smul.addr %s196, 8
        %s198 = scalar_lea.vmem %s0, %s197
        %p199 = pneg %p40
        %p200 = pneg %p37
        %p201 = pneg %p61
        %p202 = pneg %p58
        %p203 = pneg %p82
        %p204 = pneg %p79
        %p205 = pneg %p103
        %p206 = pneg %p100
        %p207 = pneg %p124
        %p208 = pneg %p121
        %p209 = pneg %p150
        %p210 = pneg %p147
        %s211 = sand.u32 %s137, 1
        %s212 = scalar_lea.sflag [#allocation3], %s211
        %s213 = sand.u32 %s137, 1
        %s214 = smul.addr %s213, 8
        %s215 = scalar_lea.vmem [#allocation2], %s214
        %p216 = scmp.lt.s32.totalorder %s19, 1
        %s217 = scalar_select %p216, %s19, 1
        %s218 = smul.addr %s217, 8
        %s219 = scalar_lea.vmem %s0, %s218
        %v220 = vld [vmem:[%s219] sm:$0xff]
        %vm221 = vcmask 261120
        %v222 = vsel %vm221, %v220, 0.0
        %223 = vadd.xlane.f32.xlu0 %v222
        %v224 = vpop.xlane.xlu0 %223
        %v225 = vrcp.pop 32.0
        %v226 = vmul.f32 32.0, %v225
        %v227 = vsub.f32 1.0, %v226
        %v228 = vmul.f32 %v225, %v227
        %v229 = vadd.f32 %v225, %v228
        %vm230 = vweird.f32 %v225
        %v231 = vsel %vm230, %v225, %v229
        %v232 = vmul.f32 %v224, %v231
        %v233 = vsub.f32 %v220, %v232
        %v234 = vmul.f32 %v233, %v233
        %v235 = vsel %vm221, %v234, 0.0
        %236 = vadd.xlane.f32.xlu0 %v235
        %v237 = vpop.xlane.xlu0 %236
        %v238 = vmul.f32 %v237, %v231
        %v239 = vadd.f32 %v238, 1e-05
        %v240 = vrsqrt.pop %v239
        %v241 = vmul.f32 %v240, %v239
        %v242 = vmul.f32 %v241, %v240
        %v243 = vmul.f32 0.5, %v242
        %v244 = vsub.f32 1.5, %v243
        %v245 = vmul.f32 %v240, %v244
        %vm246 = vweird.f32 %v239
        %vm247 = vweird.f32 %v240
        %vm248 = vmor %vm246, %vm247
        %v249 = vsel %vm248, %v240, %v245
        %v250 = vmul.f32 %v233, %v249
        %v251 = vld [vmem:[%s1] sm:$0xff]
        %v252 = vld [vmem:[%s1 + $0x8] sm:$0xff]
        %v253 = vld [vmem:[%s1 + $0x10] sm:$0xff]
        %v254 = vld [vmem:[%s1 + $0x18] sm:$0xff]
        %v255 = vld [vmem:[%s2] sm:$0x1]
        %v257 = vperm.slane %v255, 0
        %v260 = vsel %vm221, %v250, 0
        %262 = vmatpush.msra.mxu0 0.0
        %263 = vmatpush.msra.mxu0 0.0
        %264 = vmatpush.msra.mxu0 0.0
        %265 = vmatpush.msra.mxu0 0.0
        %266 = vmatpush.msra.mxu0 0.0
        %267 = vmatpush.msra.mxu0 0.0
        %268 = vmatpush.msra.mxu0 0.0
        %269 = vmatpush.msra.mxu0 0.0
        %270 = vmatpush.msra.mxu0 0.0
        %271 = vmatpush.msra.mxu0 0.0
        %272 = vmatpush.msra.mxu0 0.0
        %273 = vmatpush.msra.mxu0 0.0
        %274 = vmatpush.msra.mxu0 %v254
        %275 = vmatpush.msra.mxu0 %v253
        %276 = vmatpush.msra.mxu0 %v252
        %277 = vmatpush.msra.mxu0 %v251
        %278 = vmatmul.f32.gmra.mxu0 %v260
        %v279 = vpop.f32.mrf.mxu0
        %v280 = vadd.f32 %v257, %v279
        %281 = vdwg.mxu0
        %v282 = vmul.f32 %v280, 0.5
        %v283 = vmul.f32 %v280, 0.70710677
        %v284 = vmul.f32 %v283, %v283
        %v285 = vmin.f32 16.0, %v284
        %v286 = vmul.f32 %v285, 2.1237322e-06
        %v287 = vadd.f32 %v286, 0.00028619796
        %v288 = vmul.f32 %v285, %v287
        %v289 = vadd.f32 %v288, 0.0036580483
        %v290 = vmul.f32 %v285, %v289
        %v291 = vadd.f32 %v290, 0.05243302
        %v292 = vmul.f32 %v285, %v291
        %v293 = vadd.f32 %v292, 0.18741608
        %v294 = vmul.f32 %v285, %v293
        %v295 = vadd.f32 %v294, 1.1283791
        %v296 = vmul.f32 %v283, %v295
        %v297 = vmul.f32 %v285, 3.8918573e-05
        %v298 = vadd.f32 %v297, 0.001143296
        %v299 = vmul.f32 %v285, %v298
        %v300 = vadd.f32 %v299, 0.014752088
        %v301 = vmul.f32 %v285, %v300
        %v302 = vadd.f32 %v301, 0.112945676
        %v303 = vmul.f32 %v285, %v302
        %v304 = vadd.f32 %v303, 0.4994258
        %v305 = vmul.f32 %v285, %v304
        %v306 = vadd.f32 %v305, 1.0
        %v307 = vrcp.pop %v306
        %v308 = vmul.f32 %v306, %v307
        %v309 = vsub.f32 1.0, %v308
        %v310 = vmul.f32 %v307, %v309
        %v311 = vadd.f32 %v307, %v310
        %vm312 = vweird.f32 %v306
        %vm313 = vweird.f32 %v307
        %vm314 = vmor %vm312, %vm313
        %v315 = vsel %vm314, %v307, %v311
        %v316 = vand.u32 2147483647, %v306
        %vm317 = vcmp.eq.f32.partialorder %v316, 8.507059e+37
        %v318 = vand.u32 %v306, 2147483648
        %v319 = vor.u32 1.1754944e-38, %v318
        %v320 = vsel %vm317, %v319, %v315
        %v321 = vmul.f32 %v296, %v320
        %v322 = vmin.f32 %v321, 1.0
        %v323 = vmax.f32 %v322, -1.0
        %v324 = vadd.f32 %v323, 1.0
        %v325 = vmul.f32 %v282, %v324
        %v326 = vld [vmem:[%s3] sm:$0xff]
        %v327 = vld [vmem:[%s3 + $0x8] sm:$0xff]
        %v328 = vld [vmem:[%s3 + $0x10] sm:$0xff]
        %v329 = vld [vmem:[%s3 + $0x18] sm:$0xff]
        %v330 = vld [vmem:[%s3 + $0x20] sm:$0xff]
        %v331 = vld [vmem:[%s3 + $0x28] sm:$0xff]
        %v332 = vld [vmem:[%s3 + $0x30] sm:$0xff]
        %v333 = vld [vmem:[%s3 + $0x38] sm:$0xff]
        %v334 = vld [vmem:[%s4] sm:$0x1]
        %v336 = vperm.slane %v334, 0
        %vm338 = vcmask 523264
        %v340 = vsel %vm338, %v325, 0
        %342 = vmatpush.msra.mxu0 0.0
        %343 = vmatpush.msra.mxu0 0.0
        %344 = vmatpush.msra.mxu0 0.0
        %345 = vmatpush.msra.mxu0 0.0
        %346 = vmatpush.msra.mxu0 0.0
        %347 = vmatpush.msra.mxu0 0.0
        %348 = vmatpush.msra.mxu0 0.0
        %349 = vmatpush.msra.mxu0 0.0
        %350 = vmatpush.msra.mxu0 %v333
        %351 = vmatpush.msra.mxu0 %v332
        %352 = vmatpush.msra.mxu0 %v331
        %353 = vmatpush.msra.mxu0 %v330
        %354 = vmatpush.msra.mxu0 %v329
        %355 = vmatpush.msra.mxu0 %v328
        %356 = vmatpush.msra.mxu0 %v327
        %357 = vmatpush.msra.mxu0 %v326
        %358 = vmatmul.f32.gmra.mxu0 %v340
        %v359 = vpop.f32.mrf.mxu0
        %v360 = vadd.f32 %v336, %v359
        %361 = vdwg.mxu0
        %362 = vst.msk [vmem:[%s215] sm:$0xff] %vm221, %v360
        %s363 = sand.u32 %s137, 1
        %s364 = scalar_lea.sflag [#allocation3], %s363
        %s365 = sand.u32 %s137, 1
        %s366 = smul.addr %s365, 8
        %s367 = scalar_lea.vmem [#allocation2], %s366
        // Predicated region
        $region41: #{adapter_forward.1} parent=39 // pred_check
          %p368 = pneg %p147
        $region42: #{adapter_forward.1} parent=39 // pred_check_branch
          %370 = sbr.rel (%p368) target = $region44
        $region43: #{adapter_forward.1} parent=39 // pred_region
          %372 = vsyncadd %s364, 0
          %s373 = smul.addr %s19, 8
          %s374 = scalar_lea.hbm %s5, %s373
          %s376 = sshll.u32 %s367, 4
          %s377 = int_to_ptr.vmem [resolvable:$true] %s376
          %s378 = sshll.u32 %s374, 4
          %s379 = int_to_ptr.hbm [resolvable:$true] %s378
          %381 = dma.vmem_to_hbm [thread:$0]  %s377, 128, %s379, %s364
        $region44: #{adapter_forward.1} parent=39 // pred_fallthru
          _
      $region40: #{adapter_forward.1} parent=5 // pred_fallthru
        _
      %p382 = scmp.le.s32.totalorder 2, %s14
      // Predicated region
      $region45: #{adapter_forward.1} parent=5 // pred_check
        %p383 = pneg %p382
      $region46: #{adapter_forward.1} parent=5 // pred_check_branch
        %385 = sbr.rel (%p383) target = $region48
      $region47: #{adapter_forward.1} parent=5 // pred_region
        %s386 = ssub.s32 %s14, 2
        // Predicated region
        $region49: #{adapter_forward.1} parent=47 // pred_check
          %p387 = pneg %p153
        $region50: #{adapter_forward.1} parent=47 // pred_check_branch
          %389 = sbr.rel (%p387) target = $region52
        $region51: #{adapter_forward.1} parent=47 // pred_region
          %s390 = sand.u32 %s138, 1
          %s391 = scalar_lea.sflag [#allocation3], %s390
          %s392 = sand.u32 %s138, 1
          %s393 = smul.addr %s392, 8
          %s394 = scalar_lea.vmem [#allocation2], %s393
          %396 = dma.done %s391, 128
        $region52: #{adapter_forward.1} parent=47 // pred_fallthru
          _
      $region48: #{adapter_forward.1} parent=5 // pred_fallthru
        _
    $region6: #{adapter_forward.1} parent=1 // loop_footer
      %s18 = sadd.s32 1, %s14
    $region7: #{adapter_forward.1} parent=1 // loop_footer_branch
      %13 = sbr.rel target = $region3
    $region8: #{adapter_forward.1} parent=1 // loop_exit
      _
    %397 = vsyncpa [#allocation3], 1
    %s398 = scalar_lea.sflag [#allocation3], 1
    %399 = vsyncpa %s398, 1

</llo_original>
